<compile_context>
chip_gen: v5e
topology: v5e:2x2
jax: 0.10.0
libtpu: 0.0.40
codegen_flags: <defaults>
</compile_context>

<pallas_src>
import jax
import jax.numpy as jnp
from jax.experimental import pallas as pl
from jax.experimental.pallas import tpu as pltpu

# PyTorch defaults
K1, K2, K3 = 2, 3, 4
HIDDEN = 100
CHANNELS = 12
LINEAR_MULT = 9                                            # length after the 3 valid convs
SEQ_LEN = LINEAR_MULT + (K1 - 1) + (K2 - 1) + (K3 - 1)     # = 15
FLAT = LINEAR_MULT * CHANNELS                              # = 108
HPAD = 128                                                 # lane padding per head
OUT_PAD = 2 * HPAD                                         # fused (mu | var) output width
BN_EPS = 1e-5


# ---------------------------------------------------------------------------
# Kernel
# ---------------------------------------------------------------------------
def _dwconv_bn_relu(x, w, gamma, beta, k):
    """Depthwise conv1d (valid, bias-free*) + training-mode BatchNorm1d + ReLU.

    x: (B, L, C); w: (k, C); gamma/beta: (C,).
    *The conv bias is omitted on purpose: a per-channel constant is exactly
    cancelled by the training-mode BN that follows.
    Shifted two-pass BN statistics; normalization folded into one FMA.
    """
    lout = x.shape[1] - k + 1
    acc = x[:, 0:lout, :] * w[0, :]
    for t in range(1, k):                                  # unrolled: k is 2 / 3 / 4
        acc = acc + x[:, t:t + lout, :] * w[t, :]
    inv_n = 1.0 / float(acc.shape[0] * acc.shape[1])
    mean = jnp.sum(acc, axis=(0, 1), keepdims=True) * inv_n
    d = acc - mean
    var = jnp.sum(d * d, axis=(0, 1), keepdims=True) * inv_n   # biased variance (BN training)
    scale = gamma * jax.lax.rsqrt(var + BN_EPS)                # rsqrt -> EUP (free slot)
    return jnp.maximum(d * scale + beta, 0.0)


def encoder_kernel(x_ref, cp_ref, wf_ref, bias_ref, out_ref):
    x = x_ref[...]                                         # (B, 15, 12)
    cp = cp_ref[...]                                       # (15, 12) packed conv/BN params
    h = _dwconv_bn_relu(x, cp[0:2],  cp[2],  cp[3],  K1)   # (B, 14, 12)
    h = _dwconv_bn_relu(h, cp[4:7],  cp[7],  cp[8],  K2)   # (B, 12, 12)
    h = _dwconv_bn_relu(h, cp[9:13], cp[13], cp[14], K3)   # (B,  9, 12)
    # Fused fc_0 @ [fc_mu | fc_var]: contract the (L'=9, C=12) activation axes
    # against the (9, 12, 256) fused weight as 9 accumulated MXU dots — no
    # flatten scratch, no masked partial stores, no store->load round trip.
    acc = jnp.dot(h[:, 0, :], wf_ref[0], preferred_element_type=jnp.float32)
    for l in range(1, LINEAR_MULT):
        acc = acc + jnp.dot(h[:, l, :], wf_ref[l],
                            preferred_element_type=jnp.float32)
    out_ref[...] = acc + bias_ref[...]                     # (B, 256) = mu | var


# ---------------------------------------------------------------------------
# Wrapper
# ---------------------------------------------------------------------------
def encoder_forward(x, kp):
    B = x.shape[0]
    vmem = lambda: pl.BlockSpec(memory_space=pltpu.MemorySpace.VMEM)
    out = pl.pallas_call(
        encoder_kernel,
        out_shape=jax.ShapeDtypeStruct((B, OUT_PAD), jnp.float32),
        in_specs=[vmem() for _ in range(4)],
        out_specs=vmem(),
    )(x, kp['conv_slab'], kp['wf'], kp['bias'])
    mu = out[:, :HIDDEN]
    var = out[:, HPAD:HPAD + HIDDEN]
    return mu, var


# ---------------------------------------------------------------------------
# Deterministic parameter init (PyTorch-shaped), conversion, and JAX reference
# ---------------------------------------------------------------------------
def torch_like_params(key):
    ks = iter(jax.random.split(key, 32))

    def u(shape, scale=0.3):
        return jax.random.uniform(next(ks), shape, jnp.float32, -scale, scale)

    p = {}
    for i, k in zip((1, 2, 3), (K1, K2, K3)):
        p[f'conv{i}_w'] = u((CHANNELS, 1, k))          # nn.Conv1d depthwise weight
        p[f'conv{i}_b'] = u((CHANNELS,))
        p[f'bn{i}_g'] = 1.0 + u((CHANNELS,), 0.1)      # BatchNorm weight
        p[f'bn{i}_b'] = u((CHANNELS,), 0.1)            # BatchNorm bias
    p['fc0_w'] = u((HIDDEN, FLAT))
    p['fc0_b'] = u((HIDDEN,))
    p['fcmu_w'] = u((HIDDEN, HIDDEN))
    p['fcmu_b'] = u((HIDDEN,))
    p['fcvar_w'] = u((HIDDEN, HIDDEN))
    p['fcvar_b'] = u((HIDDEN,))
    return p


def to_kernel_params(p):
    # Packed conv/BN slab (conv biases dropped: exactly cancelled by training-mode BN):
    # [w1(2); g1; be1; w2(3); g2; be2; w3(4); g3; be3] -> (15, C)
    rows = []
    for i in (1, 2, 3):
        rows.append(jnp.transpose(p[f'conv{i}_w'][:, 0, :], (1, 0)))   # (k, C)
        rows.append(p[f'bn{i}_g'][None, :])
        rows.append(p[f'bn{i}_b'][None, :])
    conv_slab = jnp.concatenate(rows, axis=0)                          # (15, C)

    # Offline fold of fc_0 into fc_mu / fc_var (valid: no nonlinearity between them):
    #   mu  = (hf @ W0^T + b0) @ Wmu^T  + bmu  = hf @ (W0^T Wmu^T)  + (b0 @ Wmu^T  + bmu)
    #   var = (hf @ W0^T + b0) @ Wvar^T + bvar = hf @ (W0^T Wvar^T) + (b0 @ Wvar^T + bvar)
    w0t = p['fc0_w'].T                                                 # (108, 100), rows in c*L'+l order
    wmu_f = w0t @ p['fcmu_w'].T                                        # (108, 100)
    wvar_f = w0t @ p['fcvar_w'].T                                      # (108, 100)
    pad = ((0, 0), (0, HPAD - HIDDEN))
    wf = jnp.concatenate([jnp.pad(wmu_f, pad), jnp.pad(wvar_f, pad)], axis=1)  # (108, 256)
    # PyTorch flatten order is c*L'+l; the kernel contracts (l, c) -> permute rows.
    wf = wf.reshape(CHANNELS, LINEAR_MULT, OUT_PAD).transpose(1, 0, 2)         # (9, 12, 256)
    # TODO(synk): cast `wf` to bfloat16 in production (halves the dominant weight
    # DMA); kept float32 here so the 1e-3 reference tolerance passes comfortably.

    bmu_f = p['fc0_b'] @ p['fcmu_w'].T + p['fcmu_b']                   # (100,)
    bvar_f = p['fc0_b'] @ p['fcvar_w'].T + p['fcvar_b']                # (100,)
    bias = jnp.zeros((1, OUT_PAD), jnp.float32)
    bias = bias.at[0, :HIDDEN].set(bmu_f)
    bias = bias.at[0, HPAD:HPAD + HIDDEN].set(bvar_f)

    return {'conv_slab': conv_slab, 'wf': wf, 'bias': bias}


def reference_forward(x, p):
    """Pure-JAX mirror of the PyTorch forward (NCL internally, two-pass BN stats,
    conv bias included — the kernel drops it because training-mode BN cancels it)."""
    xt = jnp.transpose(x, (0, 2, 1))                       # (B, C, L)

    def stage(xc, w, b, g, be, k):
        B, C, L = xc.shape
        lout = L - k + 1
        out = jnp.zeros((B, C, lout), jnp.float32)
        for t in range(k):
            out = out + xc[:, :, t:t + lout] * w[:, 0, t][None, :, None]
        out = out + b[None, :, None]
        mean = jnp.mean(out, axis=(0, 2), keepdims=True)
        var = jnp.mean((out - mean) ** 2, axis=(0, 2), keepdims=True)
        out = (out - mean) / jnp.sqrt(var + BN_EPS)
        out = out * g[None, :, None] + be[None, :, None]
        return jnp.maximum(out, 0.0)

    h = stage(xt, p['conv1_w'], p['conv1_b'], p['bn1_g'], p['bn1_b'], K1)
    h = stage(h, p['conv2_w'], p['conv2_b'], p['bn2_g'], p['bn2_b'], K2)
    h = stage(h, p['conv3_w'], p['conv3_b'], p['bn3_g'], p['bn3_b'], K3)
    hf = h.reshape(h.shape[0], -1)                          # (B, C*L') in C-major order
    h0 = hf @ p['fc0_w'].T + p['fc0_b']
    mu = h0 @ p['fcmu_w'].T + p['fcmu_b']
    var = h0 @ p['fcvar_w'].T + p['fcvar_b']
    return mu, var


if __name__ == "__main__":
    key = jax.random.PRNGKey(0)
    kx, kparams = jax.random.split(key)

    B = 2
    x = jax.random.normal(kx, (B, SEQ_LEN, CHANNELS), jnp.float32)   # (2, 15, 12)

    p = torch_like_params(kparams)
    kp = to_kernel_params(p)

    mu, var = encoder_forward(x, kp)
    jax.block_until_ready((mu, var))

    mu_ref, var_ref = reference_forward(x, p)
    assert mu.shape == (B, HIDDEN) and var.shape == (B, HIDDEN)
    assert jnp.allclose(mu, mu_ref, rtol=1e-3, atol=1e-3), "fc_mu mismatch"
    assert jnp.allclose(var, var_ref, rtol=1e-3, atol=1e-3), "fc_var mismatch"

    print("KERNEL_OK")
</pallas_src>

<mosaic_0001>
module attributes {stable_mosaic.version = 11 : i64} {
  func.func @encoder_kernel(%arg0: memref<2x15x12xf32, #tpu.memory_space<vmem>>, %arg1: memref<15x12xf32, #tpu.memory_space<vmem>>, %arg2: memref<9x12x256xf32, #tpu.memory_space<vmem>>, %arg3: memref<1x256xf32, #tpu.memory_space<vmem>>, %arg4: memref<2x256xf32, #tpu.memory_space<vmem>>) attributes {dimension_semantics = [], scalar_prefetch = 0 : i64, scratch_operands = 0 : i64, tpu.core_type = #tpu.core_type<tc>} {
    %c0 = arith.constant 0 : index
    %c0_0 = arith.constant 0 : index
    %c0_1 = arith.constant 0 : index
    %0 = vector.load %arg0[%c0, %c0_0, %c0_1] : memref<2x15x12xf32, #tpu.memory_space<vmem>>, vector<2x15x12xf32>
    %c0_2 = arith.constant 0 : index
    %c0_3 = arith.constant 0 : index
    %1 = vector.load %arg1[%c0_2, %c0_3] : memref<15x12xf32, #tpu.memory_space<vmem>>, vector<15x12xf32>
    %2 = vector.extract_strided_slice %1 {offsets = [0, 0], sizes = [2, 12], strides = [1, 1]} : vector<15x12xf32> to vector<2x12xf32>
    %3 = vector.extract_strided_slice %1 {offsets = [2, 0], sizes = [1, 12], strides = [1, 1]} : vector<15x12xf32> to vector<1x12xf32>
    %4 = vector.shape_cast %3 : vector<1x12xf32> to vector<12xf32>
    %5 = vector.extract_strided_slice %1 {offsets = [3, 0], sizes = [1, 12], strides = [1, 1]} : vector<15x12xf32> to vector<1x12xf32>
    %6 = vector.shape_cast %5 : vector<1x12xf32> to vector<12xf32>
    %7 = vector.extract_strided_slice %0 {offsets = [0, 0, 0], sizes = [2, 14, 12], strides = [1, 1, 1]} : vector<2x15x12xf32> to vector<2x14x12xf32>
    %8 = vector.extract_strided_slice %2 {offsets = [0, 0], sizes = [1, 12], strides = [1, 1]} : vector<2x12xf32> to vector<1x12xf32>
    %9 = vector.shape_cast %8 : vector<1x12xf32> to vector<12xf32>
    %10 = vector.shape_cast %9 : vector<12xf32> to vector<1x1x12xf32>
    %11 = vector.broadcast %10 : vector<1x1x12xf32> to vector<2x14x12xf32>
    %12 = arith.mulf %7, %11 : vector<2x14x12xf32>
    %13 = vector.extract_strided_slice %0 {offsets = [0, 1, 0], sizes = [2, 14, 12], strides = [1, 1, 1]} : vector<2x15x12xf32> to vector<2x14x12xf32>
    %14 = vector.extract_strided_slice %2 {offsets = [1, 0], sizes = [1, 12], strides = [1, 1]} : vector<2x12xf32> to vector<1x12xf32>
    %15 = vector.shape_cast %14 : vector<1x12xf32> to vector<12xf32>
    %16 = vector.shape_cast %15 : vector<12xf32> to vector<1x1x12xf32>
    %17 = vector.broadcast %16 : vector<1x1x12xf32> to vector<2x14x12xf32>
    %18 = arith.mulf %13, %17 : vector<2x14x12xf32>
    %19 = arith.addf %12, %18 : vector<2x14x12xf32>
    %cst = arith.constant dense<0.000000e+00> : vector<12xf32>
    %20 = vector.multi_reduction <add>, %19, %cst [0, 1] : vector<2x14x12xf32> to vector<12xf32>
    %21 = vector.shape_cast %20 : vector<12xf32> to vector<1x1x12xf32>
    %cst_4 = arith.constant 0.0357142873 : f32
    %22 = vector.broadcast %cst_4 : f32 to vector<1x1x12xf32>
    %23 = arith.mulf %21, %22 : vector<1x1x12xf32>
    %24 = vector.broadcast %23 : vector<1x1x12xf32> to vector<2x14x12xf32>
    %25 = arith.subf %19, %24 : vector<2x14x12xf32>
    %26 = arith.mulf %25, %25 : vector<2x14x12xf32>
    %cst_5 = arith.constant dense<0.000000e+00> : vector<12xf32>
    %27 = vector.multi_reduction <add>, %26, %cst_5 [0, 1] : vector<2x14x12xf32> to vector<12xf32>
    %28 = vector.shape_cast %27 : vector<12xf32> to vector<1x1x12xf32>
    %cst_6 = arith.constant 0.0357142873 : f32
    %29 = vector.broadcast %cst_6 : f32 to vector<1x1x12xf32>
    %30 = arith.mulf %28, %29 : vector<1x1x12xf32>
    %cst_7 = arith.constant 9.99999974E-6 : f32
    %31 = vector.broadcast %cst_7 : f32 to vector<1x1x12xf32>
    %32 = arith.addf %30, %31 : vector<1x1x12xf32>
    %33 = math.rsqrt %32 : vector<1x1x12xf32>
    %34 = vector.shape_cast %4 : vector<12xf32> to vector<1x1x12xf32>
    %35 = arith.mulf %34, %33 : vector<1x1x12xf32>
    %36 = vector.broadcast %35 : vector<1x1x12xf32> to vector<2x14x12xf32>
    %37 = arith.mulf %25, %36 : vector<2x14x12xf32>
    %38 = vector.shape_cast %6 : vector<12xf32> to vector<1x1x12xf32>
    %39 = vector.broadcast %38 : vector<1x1x12xf32> to vector<2x14x12xf32>
    %40 = arith.addf %37, %39 : vector<2x14x12xf32>
    %cst_8 = arith.constant 0.000000e+00 : f32
    %41 = vector.broadcast %cst_8 : f32 to vector<2x14x12xf32>
    %42 = arith.maximumf %40, %41 : vector<2x14x12xf32>
    %43 = vector.extract_strided_slice %1 {offsets = [4, 0], sizes = [3, 12], strides = [1, 1]} : vector<15x12xf32> to vector<3x12xf32>
    %44 = vector.extract_strided_slice %1 {offsets = [7, 0], sizes = [1, 12], strides = [1, 1]} : vector<15x12xf32> to vector<1x12xf32>
    %45 = vector.shape_cast %44 : vector<1x12xf32> to vector<12xf32>
    %46 = vector.extract_strided_slice %1 {offsets = [8, 0], sizes = [1, 12], strides = [1, 1]} : vector<15x12xf32> to vector<1x12xf32>
    %47 = vector.shape_cast %46 : vector<1x12xf32> to vector<12xf32>
    %48 = vector.extract_strided_slice %42 {offsets = [0, 0, 0], sizes = [2, 12, 12], strides = [1, 1, 1]} : vector<2x14x12xf32> to vector<2x12x12xf32>
    %49 = vector.extract_strided_slice %43 {offsets = [0, 0], sizes = [1, 12], strides = [1, 1]} : vector<3x12xf32> to vector<1x12xf32>
    %50 = vector.shape_cast %49 : vector<1x12xf32> to vector<12xf32>
    %51 = vector.shape_cast %50 : vector<12xf32> to vector<1x1x12xf32>
    %52 = vector.broadcast %51 : vector<1x1x12xf32> to vector<2x12x12xf32>
    %53 = arith.mulf %48, %52 : vector<2x12x12xf32>
    %54 = vector.extract_strided_slice %42 {offsets = [0, 1, 0], sizes = [2, 12, 12], strides = [1, 1, 1]} : vector<2x14x12xf32> to vector<2x12x12xf32>
    %55 = vector.extract_strided_slice %43 {offsets = [1, 0], sizes = [1, 12], strides = [1, 1]} : vector<3x12xf32> to vector<1x12xf32>
    %56 = vector.shape_cast %55 : vector<1x12xf32> to vector<12xf32>
    %57 = vector.shape_cast %56 : vector<12xf32> to vector<1x1x12xf32>
    %58 = vector.broadcast %57 : vector<1x1x12xf32> to vector<2x12x12xf32>
    %59 = arith.mulf %54, %58 : vector<2x12x12xf32>
    %60 = arith.addf %53, %59 : vector<2x12x12xf32>
    %61 = vector.extract_strided_slice %42 {offsets = [0, 2, 0], sizes = [2, 12, 12], strides = [1, 1, 1]} : vector<2x14x12xf32> to vector<2x12x12xf32>
    %62 = vector.extract_strided_slice %43 {offsets = [2, 0], sizes = [1, 12], strides = [1, 1]} : vector<3x12xf32> to vector<1x12xf32>
    %63 = vector.shape_cast %62 : vector<1x12xf32> to vector<12xf32>
    %64 = vector.shape_cast %63 : vector<12xf32> to vector<1x1x12xf32>
    %65 = vector.broadcast %64 : vector<1x1x12xf32> to vector<2x12x12xf32>
    %66 = arith.mulf %61, %65 : vector<2x12x12xf32>
    %67 = arith.addf %60, %66 : vector<2x12x12xf32>
    %cst_9 = arith.constant dense<0.000000e+00> : vector<12xf32>
    %68 = vector.multi_reduction <add>, %67, %cst_9 [0, 1] : vector<2x12x12xf32> to vector<12xf32>
    %69 = vector.shape_cast %68 : vector<12xf32> to vector<1x1x12xf32>
    %cst_10 = arith.constant 0.0416666679 : f32
    %70 = vector.broadcast %cst_10 : f32 to vector<1x1x12xf32>
    %71 = arith.mulf %69, %70 : vector<1x1x12xf32>
    %72 = vector.broadcast %71 : vector<1x1x12xf32> to vector<2x12x12xf32>
    %73 = arith.subf %67, %72 : vector<2x12x12xf32>
    %74 = arith.mulf %73, %73 : vector<2x12x12xf32>
    %cst_11 = arith.constant dense<0.000000e+00> : vector<12xf32>
    %75 = vector.multi_reduction <add>, %74, %cst_11 [0, 1] : vector<2x12x12xf32> to vector<12xf32>
    %76 = vector.shape_cast %75 : vector<12xf32> to vector<1x1x12xf32>
    %cst_12 = arith.constant 0.0416666679 : f32
    %77 = vector.broadcast %cst_12 : f32 to vector<1x1x12xf32>
    %78 = arith.mulf %76, %77 : vector<1x1x12xf32>
    %cst_13 = arith.constant 9.99999974E-6 : f32
    %79 = vector.broadcast %cst_13 : f32 to vector<1x1x12xf32>
    %80 = arith.addf %78, %79 : vector<1x1x12xf32>
    %81 = math.rsqrt %80 : vector<1x1x12xf32>
    %82 = vector.shape_cast %45 : vector<12xf32> to vector<1x1x12xf32>
    %83 = arith.mulf %82, %81 : vector<1x1x12xf32>
    %84 = vector.broadcast %83 : vector<1x1x12xf32> to vector<2x12x12xf32>
    %85 = arith.mulf %73, %84 : vector<2x12x12xf32>
    %86 = vector.shape_cast %47 : vector<12xf32> to vector<1x1x12xf32>
    %87 = vector.broadcast %86 : vector<1x1x12xf32> to vector<2x12x12xf32>
    %88 = arith.addf %85, %87 : vector<2x12x12xf32>
    %cst_14 = arith.constant 0.000000e+00 : f32
    %89 = vector.broadcast %cst_14 : f32 to vector<2x12x12xf32>
    %90 = arith.maximumf %88, %89 : vector<2x12x12xf32>
    %91 = vector.extract_strided_slice %1 {offsets = [9, 0], sizes = [4, 12], strides = [1, 1]} : vector<15x12xf32> to vector<4x12xf32>
    %92 = vector.extract_strided_slice %1 {offsets = [13, 0], sizes = [1, 12], strides = [1, 1]} : vector<15x12xf32> to vector<1x12xf32>
    %93 = vector.shape_cast %92 : vector<1x12xf32> to vector<12xf32>
    %94 = vector.extract_strided_slice %1 {offsets = [14, 0], sizes = [1, 12], strides = [1, 1]} : vector<15x12xf32> to vector<1x12xf32>
    %95 = vector.shape_cast %94 : vector<1x12xf32> to vector<12xf32>
    %96 = vector.extract_strided_slice %90 {offsets = [0, 0, 0], sizes = [2, 9, 12], strides = [1, 1, 1]} : vector<2x12x12xf32> to vector<2x9x12xf32>
    %97 = vector.extract_strided_slice %91 {offsets = [0, 0], sizes = [1, 12], strides = [1, 1]} : vector<4x12xf32> to vector<1x12xf32>
    %98 = vector.shape_cast %97 : vector<1x12xf32> to vector<12xf32>
    %99 = vector.shape_cast %98 : vector<12xf32> to vector<1x1x12xf32>
    %100 = vector.broadcast %99 : vector<1x1x12xf32> to vector<2x9x12xf32>
    %101 = arith.mulf %96, %100 : vector<2x9x12xf32>
    %102 = vector.extract_strided_slice %90 {offsets = [0, 1, 0], sizes = [2, 9, 12], strides = [1, 1, 1]} : vector<2x12x12xf32> to vector<2x9x12xf32>
    %103 = vector.extract_strided_slice %91 {offsets = [1, 0], sizes = [1, 12], strides = [1, 1]} : vector<4x12xf32> to vector<1x12xf32>
    %104 = vector.shape_cast %103 : vector<1x12xf32> to vector<12xf32>
    %105 = vector.shape_cast %104 : vector<12xf32> to vector<1x1x12xf32>
    %106 = vector.broadcast %105 : vector<1x1x12xf32> to vector<2x9x12xf32>
    %107 = arith.mulf %102, %106 : vector<2x9x12xf32>
    %108 = arith.addf %101, %107 : vector<2x9x12xf32>
    %109 = vector.extract_strided_slice %90 {offsets = [0, 2, 0], sizes = [2, 9, 12], strides = [1, 1, 1]} : vector<2x12x12xf32> to vector<2x9x12xf32>
    %110 = vector.extract_strided_slice %91 {offsets = [2, 0], sizes = [1, 12], strides = [1, 1]} : vector<4x12xf32> to vector<1x12xf32>
    %111 = vector.shape_cast %110 : vector<1x12xf32> to vector<12xf32>
    %112 = vector.shape_cast %111 : vector<12xf32> to vector<1x1x12xf32>
    %113 = vector.broadcast %112 : vector<1x1x12xf32> to vector<2x9x12xf32>
    %114 = arith.mulf %109, %113 : vector<2x9x12xf32>
    %115 = arith.addf %108, %114 : vector<2x9x12xf32>
    %116 = vector.extract_strided_slice %90 {offsets = [0, 3, 0], sizes = [2, 9, 12], strides = [1, 1, 1]} : vector<2x12x12xf32> to vector<2x9x12xf32>
    %117 = vector.extract_strided_slice %91 {offsets = [3, 0], sizes = [1, 12], strides = [1, 1]} : vector<4x12xf32> to vector<1x12xf32>
    %118 = vector.shape_cast %117 : vector<1x12xf32> to vector<12xf32>
    %119 = vector.shape_cast %118 : vector<12xf32> to vector<1x1x12xf32>
    %120 = vector.broadcast %119 : vector<1x1x12xf32> to vector<2x9x12xf32>
    %121 = arith.mulf %116, %120 : vector<2x9x12xf32>
    %122 = arith.addf %115, %121 : vector<2x9x12xf32>
    %cst_15 = arith.constant dense<0.000000e+00> : vector<12xf32>
    %123 = vector.multi_reduction <add>, %122, %cst_15 [0, 1] : vector<2x9x12xf32> to vector<12xf32>
    %124 = vector.shape_cast %123 : vector<12xf32> to vector<1x1x12xf32>
    %cst_16 = arith.constant 0.055555556 : f32
    %125 = vector.broadcast %cst_16 : f32 to vector<1x1x12xf32>
    %126 = arith.mulf %124, %125 : vector<1x1x12xf32>
    %127 = vector.broadcast %126 : vector<1x1x12xf32> to vector<2x9x12xf32>
    %128 = arith.subf %122, %127 : vector<2x9x12xf32>
    %129 = arith.mulf %128, %128 : vector<2x9x12xf32>
    %cst_17 = arith.constant dense<0.000000e+00> : vector<12xf32>
    %130 = vector.multi_reduction <add>, %129, %cst_17 [0, 1] : vector<2x9x12xf32> to vector<12xf32>
    %131 = vector.shape_cast %130 : vector<12xf32> to vector<1x1x12xf32>
    %cst_18 = arith.constant 0.055555556 : f32
    %132 = vector.broadcast %cst_18 : f32 to vector<1x1x12xf32>
    %133 = arith.mulf %131, %132 : vector<1x1x12xf32>
    %cst_19 = arith.constant 9.99999974E-6 : f32
    %134 = vector.broadcast %cst_19 : f32 to vector<1x1x12xf32>
    %135 = arith.addf %133, %134 : vector<1x1x12xf32>
    %136 = math.rsqrt %135 : vector<1x1x12xf32>
    %137 = vector.shape_cast %93 : vector<12xf32> to vector<1x1x12xf32>
    %138 = arith.mulf %137, %136 : vector<1x1x12xf32>
    %139 = vector.broadcast %138 : vector<1x1x12xf32> to vector<2x9x12xf32>
    %140 = arith.mulf %128, %139 : vector<2x9x12xf32>
    %141 = vector.shape_cast %95 : vector<12xf32> to vector<1x1x12xf32>
    %142 = vector.broadcast %141 : vector<1x1x12xf32> to vector<2x9x12xf32>
    %143 = arith.addf %140, %142 : vector<2x9x12xf32>
    %cst_20 = arith.constant 0.000000e+00 : f32
    %144 = vector.broadcast %cst_20 : f32 to vector<2x9x12xf32>
    %145 = arith.maximumf %143, %144 : vector<2x9x12xf32>
    %146 = vector.extract_strided_slice %145 {offsets = [0, 0, 0], sizes = [2, 1, 12], strides = [1, 1, 1]} : vector<2x9x12xf32> to vector<2x1x12xf32>
    %147 = vector.shape_cast %146 : vector<2x1x12xf32> to vector<2x12xf32>
    %c0_21 = arith.constant 0 : index
    %c0_22 = arith.constant 0 : index
    %c0_23 = arith.constant 0 : index
    %148 = vector.load %arg2[%c0_21, %c0_22, %c0_23] : memref<9x12x256xf32, #tpu.memory_space<vmem>>, vector<1x12x256xf32>
    %149 = vector.shape_cast %148 : vector<1x12x256xf32> to vector<12x256xf32>
    %cst_24 = arith.constant dense<0.000000e+00> : vector<2x256xf32>
    %150 = tpu.matmul %147, %149, %cst_24 {dimension_numbers = #tpu.dot_dimension_numbers<[1], [0], [0], [1], [0, 0, 1, 1], [], []>} : vector<2x12xf32>, vector<12x256xf32>, vector<2x256xf32> -> vector<2x256xf32>
    %151 = vector.extract_strided_slice %145 {offsets = [0, 1, 0], sizes = [2, 1, 12], strides = [1, 1, 1]} : vector<2x9x12xf32> to vector<2x1x12xf32>
    %152 = vector.shape_cast %151 : vector<2x1x12xf32> to vector<2x12xf32>
    %c1 = arith.constant 1 : index
    %c0_25 = arith.constant 0 : index
    %c0_26 = arith.constant 0 : index
    %153 = vector.load %arg2[%c1, %c0_25, %c0_26] : memref<9x12x256xf32, #tpu.memory_space<vmem>>, vector<1x12x256xf32>
    %154 = vector.shape_cast %153 : vector<1x12x256xf32> to vector<12x256xf32>
    %cst_27 = arith.constant dense<0.000000e+00> : vector<2x256xf32>
    %155 = tpu.matmul %152, %154, %cst_27 {dimension_numbers = #tpu.dot_dimension_numbers<[1], [0], [0], [1], [0, 0, 1, 1], [], []>} : vector<2x12xf32>, vector<12x256xf32>, vector<2x256xf32> -> vector<2x256xf32>
    %156 = arith.addf %150, %155 : vector<2x256xf32>
    %157 = vector.extract_strided_slice %145 {offsets = [0, 2, 0], sizes = [2, 1, 12], strides = [1, 1, 1]} : vector<2x9x12xf32> to vector<2x1x12xf32>
    %158 = vector.shape_cast %157 : vector<2x1x12xf32> to vector<2x12xf32>
    %c2 = arith.constant 2 : index
    %c0_28 = arith.constant 0 : index
    %c0_29 = arith.constant 0 : index
    %159 = vector.load %arg2[%c2, %c0_28, %c0_29] : memref<9x12x256xf32, #tpu.memory_space<vmem>>, vector<1x12x256xf32>
    %160 = vector.shape_cast %159 : vector<1x12x256xf32> to vector<12x256xf32>
    %cst_30 = arith.constant dense<0.000000e+00> : vector<2x256xf32>
    %161 = tpu.matmul %158, %160, %cst_30 {dimension_numbers = #tpu.dot_dimension_numbers<[1], [0], [0], [1], [0, 0, 1, 1], [], []>} : vector<2x12xf32>, vector<12x256xf32>, vector<2x256xf32> -> vector<2x256xf32>
    %162 = arith.addf %156, %161 : vector<2x256xf32>
    %163 = vector.extract_strided_slice %145 {offsets = [0, 3, 0], sizes = [2, 1, 12], strides = [1, 1, 1]} : vector<2x9x12xf32> to vector<2x1x12xf32>
    %164 = vector.shape_cast %163 : vector<2x1x12xf32> to vector<2x12xf32>
    %c3 = arith.constant 3 : index
    %c0_31 = arith.constant 0 : index
    %c0_32 = arith.constant 0 : index
    %165 = vector.load %arg2[%c3, %c0_31, %c0_32] : memref<9x12x256xf32, #tpu.memory_space<vmem>>, vector<1x12x256xf32>
    %166 = vector.shape_cast %165 : vector<1x12x256xf32> to vector<12x256xf32>
    %cst_33 = arith.constant dense<0.000000e+00> : vector<2x256xf32>
    %167 = tpu.matmul %164, %166, %cst_33 {dimension_numbers = #tpu.dot_dimension_numbers<[1], [0], [0], [1], [0, 0, 1, 1], [], []>} : vector<2x12xf32>, vector<12x256xf32>, vector<2x256xf32> -> vector<2x256xf32>
    %168 = arith.addf %162, %167 : vector<2x256xf32>
    %169 = vector.extract_strided_slice %145 {offsets = [0, 4, 0], sizes = [2, 1, 12], strides = [1, 1, 1]} : vector<2x9x12xf32> to vector<2x1x12xf32>
    %170 = vector.shape_cast %169 : vector<2x1x12xf32> to vector<2x12xf32>
    %c4 = arith.constant 4 : index
    %c0_34 = arith.constant 0 : index
    %c0_35 = arith.constant 0 : index
    %171 = vector.load %arg2[%c4, %c0_34, %c0_35] : memref<9x12x256xf32, #tpu.memory_space<vmem>>, vector<1x12x256xf32>
    %172 = vector.shape_cast %171 : vector<1x12x256xf32> to vector<12x256xf32>
    %cst_36 = arith.constant dense<0.000000e+00> : vector<2x256xf32>
    %173 = tpu.matmul %170, %172, %cst_36 {dimension_numbers = #tpu.dot_dimension_numbers<[1], [0], [0], [1], [0, 0, 1, 1], [], []>} : vector<2x12xf32>, vector<12x256xf32>, vector<2x256xf32> -> vector<2x256xf32>
    %174 = arith.addf %168, %173 : vector<2x256xf32>
    %175 = vector.extract_strided_slice %145 {offsets = [0, 5, 0], sizes = [2, 1, 12], strides = [1, 1, 1]} : vector<2x9x12xf32> to vector<2x1x12xf32>
    %176 = vector.shape_cast %175 : vector<2x1x12xf32> to vector<2x12xf32>
    %c5 = arith.constant 5 : index
    %c0_37 = arith.constant 0 : index
    %c0_38 = arith.constant 0 : index
    %177 = vector.load %arg2[%c5, %c0_37, %c0_38] : memref<9x12x256xf32, #tpu.memory_space<vmem>>, vector<1x12x256xf32>
    %178 = vector.shape_cast %177 : vector<1x12x256xf32> to vector<12x256xf32>
    %cst_39 = arith.constant dense<0.000000e+00> : vector<2x256xf32>
    %179 = tpu.matmul %176, %178, %cst_39 {dimension_numbers = #tpu.dot_dimension_numbers<[1], [0], [0], [1], [0, 0, 1, 1], [], []>} : vector<2x12xf32>, vector<12x256xf32>, vector<2x256xf32> -> vector<2x256xf32>
    %180 = arith.addf %174, %179 : vector<2x256xf32>
    %181 = vector.extract_strided_slice %145 {offsets = [0, 6, 0], sizes = [2, 1, 12], strides = [1, 1, 1]} : vector<2x9x12xf32> to vector<2x1x12xf32>
    %182 = vector.shape_cast %181 : vector<2x1x12xf32> to vector<2x12xf32>
    %c6 = arith.constant 6 : index
    %c0_40 = arith.constant 0 : index
    %c0_41 = arith.constant 0 : index
    %183 = vector.load %arg2[%c6, %c0_40, %c0_41] : memref<9x12x256xf32, #tpu.memory_space<vmem>>, vector<1x12x256xf32>
    %184 = vector.shape_cast %183 : vector<1x12x256xf32> to vector<12x256xf32>
    %cst_42 = arith.constant dense<0.000000e+00> : vector<2x256xf32>
    %185 = tpu.matmul %182, %184, %cst_42 {dimension_numbers = #tpu.dot_dimension_numbers<[1], [0], [0], [1], [0, 0, 1, 1], [], []>} : vector<2x12xf32>, vector<12x256xf32>, vector<2x256xf32> -> vector<2x256xf32>
    %186 = arith.addf %180, %185 : vector<2x256xf32>
    %187 = vector.extract_strided_slice %145 {offsets = [0, 7, 0], sizes = [2, 1, 12], strides = [1, 1, 1]} : vector<2x9x12xf32> to vector<2x1x12xf32>
    %188 = vector.shape_cast %187 : vector<2x1x12xf32> to vector<2x12xf32>
    %c7 = arith.constant 7 : index
    %c0_43 = arith.constant 0 : index
    %c0_44 = arith.constant 0 : index
    %189 = vector.load %arg2[%c7, %c0_43, %c0_44] : memref<9x12x256xf32, #tpu.memory_space<vmem>>, vector<1x12x256xf32>
    %190 = vector.shape_cast %189 : vector<1x12x256xf32> to vector<12x256xf32>
    %cst_45 = arith.constant dense<0.000000e+00> : vector<2x256xf32>
    %191 = tpu.matmul %188, %190, %cst_45 {dimension_numbers = #tpu.dot_dimension_numbers<[1], [0], [0], [1], [0, 0, 1, 1], [], []>} : vector<2x12xf32>, vector<12x256xf32>, vector<2x256xf32> -> vector<2x256xf32>
    %192 = arith.addf %186, %191 : vector<2x256xf32>
    %193 = vector.extract_strided_slice %145 {offsets = [0, 8, 0], sizes = [2, 1, 12], strides = [1, 1, 1]} : vector<2x9x12xf32> to vector<2x1x12xf32>
    %194 = vector.shape_cast %193 : vector<2x1x12xf32> to vector<2x12xf32>
    %c8 = arith.constant 8 : index
    %c0_46 = arith.constant 0 : index
    %c0_47 = arith.constant 0 : index
    %195 = vector.load %arg2[%c8, %c0_46, %c0_47] : memref<9x12x256xf32, #tpu.memory_space<vmem>>, vector<1x12x256xf32>
    %196 = vector.shape_cast %195 : vector<1x12x256xf32> to vector<12x256xf32>
    %cst_48 = arith.constant dense<0.000000e+00> : vector<2x256xf32>
    %197 = tpu.matmul %194, %196, %cst_48 {dimension_numbers = #tpu.dot_dimension_numbers<[1], [0], [0], [1], [0, 0, 1, 1], [], []>} : vector<2x12xf32>, vector<12x256xf32>, vector<2x256xf32> -> vector<2x256xf32>
    %198 = arith.addf %192, %197 : vector<2x256xf32>
    %c0_49 = arith.constant 0 : index
    %c0_50 = arith.constant 0 : index
    %199 = vector.load %arg3[%c0_49, %c0_50] : memref<1x256xf32, #tpu.memory_space<vmem>>, vector<1x256xf32>
    %200 = vector.broadcast %199 : vector<1x256xf32> to vector<2x256xf32>
    %201 = arith.addf %198, %200 : vector<2x256xf32>
    %c0_51 = arith.constant 0 : index
    %c0_52 = arith.constant 0 : index
    %202 = vector.load %arg4[%c0_51, %c0_52] : memref<2x256xf32, #tpu.memory_space<vmem>>, vector<2x256xf32>
    tpu.vector_store %arg4[%c0_51, %c0_52], %201 {strides = array<i32>} : memref<2x256xf32, #tpu.memory_space<vmem>>, vector<2x256xf32>,
    return
  }
}

</mosaic_0001>

<llo_original>
// kernel: tpu_custom_call.1
$region0: #{tpu_custom_call.1}
  #allocation0 [shape = 'u32[]', space=smem, size = 0x4, offset = 0x4, fixed_abs, tag = 'smem constant byte address 0x4 - core index']
  #allocation1 [shape = 'u32[72,128]{1,0:T(1,128)}', space=vmem, size = 0x9000, scoped, tag = 'internal scratch']
  %s0 = inlined_call_operand.vmem [shape: f32[2,15,12], index: 0, kind: input, shape index: {}]
  %s1 = inlined_call_operand.vmem [shape: f32[15,12], index: 1, kind: input, shape index: {}]
  %s2 = inlined_call_operand.hbm [shape: f32[9,12,256], index: 2, kind: input, shape index: {}]
  %s3 = inlined_call_operand.vmem [shape: f32[1,256], index: 3, kind: input, shape index: {}]
  %s4 = inlined_call_operand.hbm [shape: f32[2,256], index: 4, kind: output, shape index: {}]
  %s5 = sld [smem:[#allocation0]]
  $region30: #{tpu_custom_call.1} parent=0
    _
  %s7 = ssub.s32 1, %s5
  %s8 = scalar_select 0, %s7, %s5
  $region1: #{tpu_custom_call.1} parent=0
    #allocation2 [shape = 'u8[147456]{0}', space=vmem, size = 0x24000, scoped, tag = 'input window, operand 2, single buffered']
    #allocation3 [shape = 's32[1]{0}', space=sflag, size = 0x4, scoped, tag = 'scoped memory for tpu_custom_call.1']
    #allocation4 [shape = 's32[1]{0}', space=sflag, size = 0x4, scoped, tag = 'scoped memory for tpu_custom_call.1']
    #allocation5 [shape = 'u8[2048]{0}', space=vmem, size = 0x800, scoped, tag = 'output window, operand 0, single buffered']
    %9 = vsyncpa [#allocation3], 0
    %10 = vsyncpa [#allocation4], 0
    // Predicated region
    $region2: #{tpu_custom_call.1} parent=1 // pred_check
      _
    $region3: #{tpu_custom_call.1} parent=1 // pred_check_branch
      %12 = sbr.rel (0) target = $region5
    $region4: #{tpu_custom_call.1} parent=1 // pred_region
      _
    $region5: #{tpu_custom_call.1} parent=1 // pred_fallthru
      _
    // Predicated region
    $region6: #{tpu_custom_call.1} parent=1 // pred_check
      _
    $region7: #{tpu_custom_call.1} parent=1 // pred_check_branch
      %14 = sbr.rel (0) target = $region9
    $region8: #{tpu_custom_call.1} parent=1 // pred_region
      _
    $region9: #{tpu_custom_call.1} parent=1 // pred_fallthru
      _
    // Predicated region
    $region10: #{tpu_custom_call.1} parent=1 // pred_check
      _
    $region11: #{tpu_custom_call.1} parent=1 // pred_check_branch
      %16 = sbr.rel (0) target = $region13
    $region12: #{tpu_custom_call.1} parent=1 // pred_region
      %18 = vsyncadd [#allocation3], 0
      %s19 = sshll.u32 %s2, 4
      %s20 = int_to_ptr.hbm [resolvable:$true] %s19
      %s21 = sshll.u32 [#allocation2], 4
      %s22 = int_to_ptr.vmem [resolvable:$true] %s21
      %27 = dma.hbm_to_vmem [thread:$0]  %s20, 4608, %s22, [#allocation3], 256, 256, 16
    $region13: #{tpu_custom_call.1} parent=1 // pred_fallthru
      _
    // Predicated region
    $region14: #{tpu_custom_call.1} parent=1 // pred_check
      _
    $region15: #{tpu_custom_call.1} parent=1 // pred_check_branch
      %29 = sbr.rel (0) target = $region17
    $region16: #{tpu_custom_call.1} parent=1 // pred_region
      _
    $region17: #{tpu_custom_call.1} parent=1 // pred_fallthru
      _
    // Predicated region
    $region18: #{tpu_custom_call.1} parent=1 // pred_check
      _
    $region19: #{tpu_custom_call.1} parent=1 // pred_check_branch
      %31 = sbr.rel (0) target = $region21
    $region20: #{tpu_custom_call.1} parent=1 // pred_region
      %33 = dma.done [#allocation3], 4608
    $region21: #{tpu_custom_call.1} parent=1 // pred_fallthru
      _
    %v34 = vld [vmem:[%s0] sm:$0xff]
    %v35 = vld [vmem:[%s0 + $0x8] sm:$0x7f]
    %v36 = vld [vmem:[%s0 + $0x10] sm:$0xff]
    %v37 = vld [vmem:[%s0 + $0x18] sm:$0x7f]
    %v38 = vld [vmem:[%s1] sm:$0xff]
    %v39 = vld [vmem:[%s1 + $0x8] sm:$0x7f]
    %v40 = vperm.slane %v38, 0
    %v41 = vmul.f32 %v34, %v40
    %v42 = vmul.f32 %v35, %v40
    %v43 = vmul.f32 %v36, %v40
    %v44 = vmul.f32 %v37, %v40
    %v45 = vperm.slane %v38, 1
    %v46 = vmul.f32 %v34, %v45
    %v47 = vmul.f32 %v35, %v45
    %v48 = vmul.f32 %v36, %v45
    %v49 = vmul.f32 %v37, %v45
    %vm54 = vcmask 1046528
    %v55 = vrot.slane %v46, 1
    %v56 = vrot.slane %v47, 1
    %v57 = vsel %vm54, %v55, %v56
    %v58 = vrot.slane %v48, 1
    %v59 = vrot.slane %v49, 1
    %v60 = vsel %vm54, %v58, %v59
    %v65 = vadd.f32 %v41, %v57
    %v66 = vadd.f32 %v42, %v56
    %v67 = vadd.f32 %v43, %v60
    %v68 = vadd.f32 %v44, %v59
    %vm69 = vcmask 97280
    %v70 = vsel %vm69, %v65, 0.0
    %vm71 = vcmask 95232
    %v72 = vsel %vm71, %v66, 0.0
    %v73 = vadd.f32 %v70, %v72
    %v74 = vsel %vm69, %v67, 0.0
    %v75 = vadd.f32 %v73, %v74
    %v76 = vsel %vm71, %v68, 0.0
    %v77 = vadd.f32 %v75, %v76
    %v78 = vrot.slane %v77, 4
    %v79 = vadd.f32 %v77, %v78
    %v80 = vrot.slane %v79, 2
    %v81 = vadd.f32 %v79, %v80
    %v82 = vrot.slane %v81, 1
    %v83 = vadd.f32 %v81, %v82
    %v84 = vmul.f32 %v83, 0.035714287
    %v85 = vsub.f32 %v65, %v84
    %v86 = vsub.f32 %v66, %v84
    %v87 = vsub.f32 %v67, %v84
    %v88 = vsub.f32 %v68, %v84
    %v89 = vmul.f32 %v85, %v85
    %v90 = vmul.f32 %v86, %v86
    %v91 = vmul.f32 %v87, %v87
    %v92 = vmul.f32 %v88, %v88
    %v93 = vsel %vm69, %v89, 0.0
    %v94 = vsel %vm71, %v90, 0.0
    %v95 = vadd.f32 %v93, %v94
    %v96 = vsel %vm69, %v91, 0.0
    %v97 = vadd.f32 %v95, %v96
    %v98 = vsel %vm71, %v92, 0.0
    %v99 = vadd.f32 %v97, %v98
    %v100 = vrot.slane %v99, 4
    %v101 = vadd.f32 %v99, %v100
    %v102 = vrot.slane %v101, 2
    %v103 = vadd.f32 %v101, %v102
    %v104 = vrot.slane %v103, 1
    %v105 = vadd.f32 %v103, %v104
    %v106 = vmul.f32 %v105, 0.035714287
    %v107 = vadd.f32 %v106, 1e-05
    %v108 = vrsqrt.pop %v107
    %v109 = vmul.f32 %v108, %v107
    %v110 = vmul.f32 %v109, %v108
    %v111 = vmul.f32 0.5, %v110
    %v112 = vsub.f32 1.5, %v111
    %v113 = vmul.f32 %v108, %v112
    %vm114 = vweird.f32 %v107
    %vm115 = vweird.f32 %v108
    %vm116 = vmor %vm114, %vm115
    %v117 = vsel %vm116, %v108, %v113
    %v118 = vmul.f32 %v38, %v117
    %v119 = vperm.slane %v118, 2
    %v120 = vmul.f32 %v85, %v119
    %v121 = vmul.f32 %v86, %v119
    %v122 = vmul.f32 %v87, %v119
    %v123 = vmul.f32 %v88, %v119
    %v124 = vperm.slane %v38, 3
    %v125 = vadd.f32 %v120, %v124
    %v126 = vadd.f32 %v121, %v124
    %v127 = vadd.f32 %v122, %v124
    %v128 = vadd.f32 %v123, %v124
    %v129 = vmax.f32 %v125, 0.0
    %v130 = vmax.f32 %v126, 0.0
    %v131 = vmax.f32 %v127, 0.0
    %v132 = vmax.f32 %v128, 0.0
    %v133 = vperm.slane %v38, 4
    %v134 = vmul.f32 %v129, %v133
    %v135 = vmul.f32 %v130, %v133
    %v136 = vmul.f32 %v131, %v133
    %v137 = vmul.f32 %v132, %v133
    %v138 = vperm.slane %v38, 5
    %v139 = vmul.f32 %v129, %v138
    %v140 = vmul.f32 %v130, %v138
    %v141 = vmul.f32 %v131, %v138
    %v142 = vmul.f32 %v132, %v138
    %v147 = vrot.slane %v139, 1
    %v148 = vrot.slane %v140, 1
    %v149 = vsel %vm54, %v147, %v148
    %v150 = vrot.slane %v141, 1
    %v151 = vrot.slane %v142, 1
    %v152 = vsel %vm54, %v150, %v151
    %v157 = vadd.f32 %v134, %v149
    %v158 = vadd.f32 %v135, %v148
    %v159 = vadd.f32 %v136, %v152
    %v160 = vadd.f32 %v137, %v151
    %v161 = vperm.slane %v38, 6
    %v162 = vmul.f32 %v129, %v161
    %v163 = vmul.f32 %v130, %v161
    %v164 = vmul.f32 %v131, %v161
    %v165 = vmul.f32 %v132, %v161
    %vm170 = vcmask 1045504
    %v171 = vrot.slane %v162, 2
    %v172 = vrot.slane %v163, 2
    %v173 = vsel %vm170, %v171, %v172
    %v174 = vrot.slane %v164, 2
    %v175 = vrot.slane %v165, 2
    %v176 = vsel %vm170, %v174, %v175
    %v181 = vadd.f32 %v157, %v173
    %v182 = vadd.f32 %v158, %v172
    %v183 = vadd.f32 %v159, %v176
    %v184 = vadd.f32 %v160, %v175
    %v185 = vsel %vm69, %v181, 0.0
    %vm186 = vcmask 93184
    %v187 = vsel %vm186, %v182, 0.0
    %v188 = vadd.f32 %v185, %v187
    %v189 = vsel %vm69, %v183, 0.0
    %v190 = vadd.f32 %v188, %v189
    %v191 = vsel %vm186, %v184, 0.0
    %v192 = vadd.f32 %v190, %v191
    %v193 = vrot.slane %v192, 4
    %v194 = vadd.f32 %v192, %v193
    %v195 = vrot.slane %v194, 2
    %v196 = vadd.f32 %v194, %v195
    %v197 = vrot.slane %v196, 1
    %v198 = vadd.f32 %v196, %v197
    %v199 = vmul.f32 %v198, 0.041666668
    %v200 = vsub.f32 %v181, %v199
    %v201 = vsub.f32 %v182, %v199
    %v202 = vsub.f32 %v183, %v199
    %v203 = vsub.f32 %v184, %v199
    %v204 = vmul.f32 %v200, %v200
    %v205 = vmul.f32 %v201, %v201
    %v206 = vmul.f32 %v202, %v202
    %v207 = vmul.f32 %v203, %v203
    %v208 = vsel %vm69, %v204, 0.0
    %v209 = vsel %vm186, %v205, 0.0
    %v210 = vadd.f32 %v208, %v209
    %v211 = vsel %vm69, %v206, 0.0
    %v212 = vadd.f32 %v210, %v211
    %v213 = vsel %vm186, %v207, 0.0
    %v214 = vadd.f32 %v212, %v213
    %v215 = vrot.slane %v214, 4
    %v216 = vadd.f32 %v214, %v215
    %v217 = vrot.slane %v216, 2
    %v218 = vadd.f32 %v216, %v217
    %v219 = vrot.slane %v218, 1
    %v220 = vadd.f32 %v218, %v219
    %v221 = vmul.f32 %v220, 0.041666668
    %v222 = vadd.f32 %v221, 1e-05
    %v223 = vrsqrt.pop %v222
    %v224 = vmul.f32 %v223, %v222
    %v225 = vmul.f32 %v224, %v223
    %v226 = vmul.f32 0.5, %v225
    %v227 = vsub.f32 1.5, %v226
    %v228 = vmul.f32 %v223, %v227
    %vm229 = vweird.f32 %v222
    %vm230 = vweird.f32 %v223
    %vm231 = vmor %vm229, %vm230
    %v232 = vsel %vm231, %v223, %v228
    %v233 = vmul.f32 %v38, %v232
    %v234 = vperm.slane %v233, 7
    %v235 = vmul.f32 %v200, %v234
    %v236 = vmul.f32 %v201, %v234
    %v237 = vmul.f32 %v202, %v234
    %v238 = vmul.f32 %v203, %v234
    %v239 = vperm.slane %v39, 0
    %v240 = vadd.f32 %v235, %v239
    %v241 = vadd.f32 %v236, %v239
    %v242 = vadd.f32 %v237, %v239
    %v243 = vadd.f32 %v238, %v239
    %v244 = vmax.f32 %v240, 0.0
    %v245 = vmax.f32 %v241, 0.0
    %v246 = vmax.f32 %v242, 0.0
    %v247 = vmax.f32 %v243, 0.0
    %v248 = vperm.slane %v39, 1
    %v249 = vmul.f32 %v244, %v248
    %v250 = vmul.f32 %v245, %v248
    %v251 = vmul.f32 %v246, %v248
    %v252 = vmul.f32 %v247, %v248
    %v253 = vperm.slane %v39, 2
    %v254 = vmul.f32 %v244, %v253
    %v255 = vmul.f32 %v245, %v253
    %v256 = vmul.f32 %v246, %v253
    %v257 = vmul.f32 %v247, %v253
    %v262 = vrot.slane %v254, 1
    %v263 = vrot.slane %v255, 1
    %v264 = vsel %vm54, %v262, %v263
    %v265 = vrot.slane %v256, 1
    %v266 = vrot.slane %v257, 1
    %v267 = vsel %vm54, %v265, %v266
    %v272 = vadd.f32 %v249, %v264
    %v273 = vadd.f32 %v250, %v263
    %v274 = vadd.f32 %v251, %v267
    %v275 = vadd.f32 %v252, %v266
    %v276 = vperm.slane %v39, 3
    %v277 = vmul.f32 %v244, %v276
    %v278 = vmul.f32 %v245, %v276
    %v279 = vmul.f32 %v246, %v276
    %v280 = vmul.f32 %v247, %v276
    %v285 = vrot.slane %v277, 2
    %v286 = vrot.slane %v278, 2
    %v287 = vsel %vm170, %v285, %v286
    %v288 = vrot.slane %v279, 2
    %v289 = vrot.slane %v280, 2
    %v290 = vsel %vm170, %v288, %v289
    %v295 = vadd.f32 %v272, %v287
    %v296 = vadd.f32 %v273, %v286
    %v297 = vadd.f32 %v274, %v290
    %v298 = vadd.f32 %v275, %v289
    %v299 = vperm.slane %v39, 4
    %v300 = vmul.f32 %v244, %v299
    %v301 = vmul.f32 %v245, %v299
    %v302 = vmul.f32 %v246, %v299
    %v303 = vmul.f32 %v247, %v299
    %vm308 = vcmask 1044480
    %v309 = vrot.slane %v300, 3
    %v310 = vrot.slane %v301, 3
    %v311 = vsel %vm308, %v309, %v310
    %v312 = vrot.slane %v302, 3
    %v313 = vrot.slane %v303, 3
    %v314 = vsel %vm308, %v312, %v313
    %v319 = vadd.f32 %v295, %v311
    %v320 = vadd.f32 %v296, %v310
    %v321 = vadd.f32 %v297, %v314
    %v322 = vadd.f32 %v298, %v313
    %v323 = vsel %vm69, %v319, 0.0
    %vm324 = vcmask 90112
    %v325 = vsel %vm324, %v320, 0.0
    %v326 = vadd.f32 %v323, %v325
    %v327 = vsel %vm69, %v321, 0.0
    %v328 = vadd.f32 %v326, %v327
    %v329 = vsel %vm324, %v322, 0.0
    %v330 = vadd.f32 %v328, %v329
    %v331 = vrot.slane %v330, 4
    %v332 = vadd.f32 %v330, %v331
    %v333 = vrot.slane %v332, 2
    %v334 = vadd.f32 %v332, %v333
    %v335 = vrot.slane %v334, 1
    %v336 = vadd.f32 %v334, %v335
    %v337 = vmul.f32 %v336, 0.055555556
    %v338 = vsub.f32 %v319, %v337
    %v339 = vsub.f32 %v320, %v337
    %v340 = vsub.f32 %v321, %v337
    %v341 = vsub.f32 %v322, %v337
    %v342 = vmul.f32 %v338, %v338
    %v343 = vmul.f32 %v339, %v339
    %v344 = vmul.f32 %v340, %v340
    %v345 = vmul.f32 %v341, %v341
    %v346 = vsel %vm69, %v342, 0.0
    %v347 = vsel %vm324, %v343, 0.0
    %v348 = vadd.f32 %v346, %v347
    %v349 = vsel %vm69, %v344, 0.0
    %v350 = vadd.f32 %v348, %v349
    %v351 = vsel %vm324, %v345, 0.0
    %v352 = vadd.f32 %v350, %v351
    %v353 = vrot.slane %v352, 4
    %v354 = vadd.f32 %v352, %v353
    %v355 = vrot.slane %v354, 2
    %v356 = vadd.f32 %v354, %v355
    %v357 = vrot.slane %v356, 1
    %v358 = vadd.f32 %v356, %v357
    %v359 = vmul.f32 %v358, 0.055555556
    %v360 = vadd.f32 %v359, 1e-05
    %v361 = vrsqrt.pop %v360
    %v362 = vmul.f32 %v361, %v360
    %v363 = vmul.f32 %v362, %v361
    %v364 = vmul.f32 0.5, %v363
    %v365 = vsub.f32 1.5, %v364
    %v366 = vmul.f32 %v361, %v365
    %vm367 = vweird.f32 %v360
    %vm368 = vweird.f32 %v361
    %vm369 = vmor %vm367, %vm368
    %v370 = vsel %vm369, %v361, %v366
    %v371 = vmul.f32 %v39, %v370
    %v372 = vperm.slane %v371, 5
    %v373 = vmul.f32 %v338, %v372
    %v374 = vmul.f32 %v339, %v372
    %v375 = vmul.f32 %v340, %v372
    %v376 = vmul.f32 %v341, %v372
    %v377 = vperm.slane %v39, 6
    %v378 = vadd.f32 %v373, %v377
    %v379 = vadd.f32 %v374, %v377
    %v380 = vadd.f32 %v375, %v377
    %v381 = vadd.f32 %v376, %v377
    %v382 = vmax.f32 %v378, 0.0
    %v383 = vmax.f32 %v379, 0.0
    %v384 = vmax.f32 %v380, 0.0
    %v385 = vmax.f32 %v381, 0.0
    %v386 = vld [vmem:[#allocation2] sm:$0xff]
    %v387 = vld [vmem:[#allocation2 + $0x8] sm:$0xff]
    %v388 = vld [vmem:[#allocation2 + $0x10] sm:$0xf]
    %v389 = vld [vmem:[#allocation2 + $0x18] sm:$0xf]
    %s390 = scalar_lea.vmem [#allocation2], 32
    %v391 = vld [vmem:[%s390] sm:$0xff]
    %v392 = vld [vmem:[%s390 + $0x8] sm:$0xff]
    %v393 = vld [vmem:[%s390 + $0x10] sm:$0xf]
    %v394 = vld [vmem:[%s390 + $0x18] sm:$0xf]
    %v397 = vrot.slane %v382, 1
    %vm398 = vcmask 1041409
    %v399 = vsel %vm398, %v384, %v397
    %v400 = vsel %vm69, %v399, 0
    %vm402 = vcmask 1043456
    %v404 = vsel %vm402, %v393, 0
    %v407 = vsel %vm402, %v394, 0
    %409 = vmatpush.msra.mxu0 0.0
    %410 = vmatpush.msra.mxu0 0.0
    %411 = vmatpush.msra.mxu0 0.0
    %412 = vmatpush.msra.mxu0 0.0
    %413 = vmatpush.msra.mxu0 0.0
    %414 = vmatpush.msra.mxu0 0.0
    %415 = vmatpush.msra.mxu0 0.0
    %416 = vmatpush.msra.mxu0 0.0
    %417 = vmatpush.msra.mxu0 0.0
    %418 = vmatpush.msra.mxu0 0.0
    %419 = vmatpush.msra.mxu0 0.0
    %420 = vmatpush.msra.mxu0 0.0
    %421 = vmatpush.msra.mxu0 0.0
    %422 = vmatpush.msra.mxu0 0.0
    %423 = vmatpush.msra.mxu0 %v404
    %424 = vmatpush.msra.mxu0 %v391
    %425 = vmatmul.f32.gmra.mxu0 %v400
    %v426 = vpop.f32.mrf.mxu0
    %v427 = vadd.f32 0.0, %v426
    %428 = vdwg.mxu0
    %429 = vmatpush.msra.mxu0 0.0
    %430 = vmatpush.msra.mxu0 0.0
    %431 = vmatpush.msra.mxu0 0.0
    %432 = vmatpush.msra.mxu0 0.0
    %433 = vmatpush.msra.mxu0 0.0
    %434 = vmatpush.msra.mxu0 0.0
    %435 = vmatpush.msra.mxu0 0.0
    %436 = vmatpush.msra.mxu0 0.0
    %437 = vmatpush.msra.mxu0 0.0
    %438 = vmatpush.msra.mxu0 0.0
    %439 = vmatpush.msra.mxu0 0.0
    %440 = vmatpush.msra.mxu0 0.0
    %441 = vmatpush.msra.mxu0 0.0
    %442 = vmatpush.msra.mxu0 0.0
    %443 = vmatpush.msra.mxu0 %v407
    %444 = vmatpush.msra.mxu0 %v392
    %445 = vmatmul.f32.gmra.mxu0 %v400
    %v446 = vpop.f32.mrf.mxu0
    %v447 = vadd.f32 0.0, %v446
    %448 = vdwg.mxu0
    %v449 = vrot.slane %v384, 7
    %v450 = vsel %vm398, %v449, %v382
    %v451 = vsel %vm69, %v450, 0
    %v454 = vsel %vm402, %v388, 0
    %v457 = vsel %vm402, %v389, 0
    %459 = vmatpush.msra.mxu0 0.0
    %460 = vmatpush.msra.mxu0 0.0
    %461 = vmatpush.msra.mxu0 0.0
    %462 = vmatpush.msra.mxu0 0.0
    %463 = vmatpush.msra.mxu0 0.0
    %464 = vmatpush.msra.mxu0 0.0
    %465 = vmatpush.msra.mxu0 0.0
    %466 = vmatpush.msra.mxu0 0.0
    %467 = vmatpush.msra.mxu0 0.0
    %468 = vmatpush.msra.mxu0 0.0
    %469 = vmatpush.msra.mxu0 0.0
    %470 = vmatpush.msra.mxu0 0.0
    %471 = vmatpush.msra.mxu0 0.0
    %472 = vmatpush.msra.mxu0 0.0
    %473 = vmatpush.msra.mxu0 %v454
    %474 = vmatpush.msra.mxu0 %v386
    %475 = vmatmul.f32.gmra.mxu0 %v451
    %v476 = vpop.f32.mrf.mxu0
    %v477 = vadd.f32 %v427, %v476
    %478 = vdwg.mxu0
    %479 = vmatpush.msra.mxu0 0.0
    %480 = vmatpush.msra.mxu0 0.0
    %481 = vmatpush.msra.mxu0 0.0
    %482 = vmatpush.msra.mxu0 0.0
    %483 = vmatpush.msra.mxu0 0.0
    %484 = vmatpush.msra.mxu0 0.0
    %485 = vmatpush.msra.mxu0 0.0
    %486 = vmatpush.msra.mxu0 0.0
    %487 = vmatpush.msra.mxu0 0.0
    %488 = vmatpush.msra.mxu0 0.0
    %489 = vmatpush.msra.mxu0 0.0
    %490 = vmatpush.msra.mxu0 0.0
    %491 = vmatpush.msra.mxu0 0.0
    %492 = vmatpush.msra.mxu0 0.0
    %493 = vmatpush.msra.mxu0 %v457
    %494 = vmatpush.msra.mxu0 %v387
    %495 = vmatmul.f32.gmra.mxu0 %v451
    %v496 = vpop.f32.mrf.mxu0
    %v497 = vadd.f32 %v447, %v496
    %498 = vdwg.mxu0
    %s499 = scalar_lea.vmem [#allocation2], 64
    %v500 = vld [vmem:[%s499] sm:$0xff]
    %v501 = vld [vmem:[%s499 + $0x8] sm:$0xff]
    %v502 = vld [vmem:[%s499 + $0x10] sm:$0xf]
    %v503 = vld [vmem:[%s499 + $0x18] sm:$0xf]
    %v504 = vrot.slane %v382, 2
    %v505 = vrot.slane %v384, 1
    %v506 = vsel %vm398, %v505, %v504
    %v507 = vsel %vm69, %v506, 0
    %v510 = vsel %vm402, %v502, 0
    %v513 = vsel %vm402, %v503, 0
    %515 = vmatpush.msra.mxu0 0.0
    %516 = vmatpush.msra.mxu0 0.0
    %517 = vmatpush.msra.mxu0 0.0
    %518 = vmatpush.msra.mxu0 0.0
    %519 = vmatpush.msra.mxu0 0.0
    %520 = vmatpush.msra.mxu0 0.0
    %521 = vmatpush.msra.mxu0 0.0
    %522 = vmatpush.msra.mxu0 0.0
    %523 = vmatpush.msra.mxu0 0.0
    %524 = vmatpush.msra.mxu0 0.0
    %525 = vmatpush.msra.mxu0 0.0
    %526 = vmatpush.msra.mxu0 0.0
    %527 = vmatpush.msra.mxu0 0.0
    %528 = vmatpush.msra.mxu0 0.0
    %529 = vmatpush.msra.mxu0 %v510
    %530 = vmatpush.msra.mxu0 %v500
    %531 = vmatmul.f32.gmra.mxu0 %v507
    %v532 = vpop.f32.mrf.mxu0
    %v533 = vadd.f32 0.0, %v532
    %534 = vdwg.mxu0
    %535 = vmatpush.msra.mxu0 0.0
    %536 = vmatpush.msra.mxu0 0.0
    %537 = vmatpush.msra.mxu0 0.0
    %538 = vmatpush.msra.mxu0 0.0
    %539 = vmatpush.msra.mxu0 0.0
    %540 = vmatpush.msra.mxu0 0.0
    %541 = vmatpush.msra.mxu0 0.0
    %542 = vmatpush.msra.mxu0 0.0
    %543 = vmatpush.msra.mxu0 0.0
    %544 = vmatpush.msra.mxu0 0.0
    %545 = vmatpush.msra.mxu0 0.0
    %546 = vmatpush.msra.mxu0 0.0
    %547 = vmatpush.msra.mxu0 0.0
    %548 = vmatpush.msra.mxu0 0.0
    %549 = vmatpush.msra.mxu0 %v513
    %550 = vmatpush.msra.mxu0 %v501
    %551 = vmatmul.f32.gmra.mxu0 %v507
    %v552 = vpop.f32.mrf.mxu0
    %v553 = vadd.f32 0.0, %v552
    %554 = vdwg.mxu0
    %v555 = vadd.f32 %v477, %v533
    %v556 = vadd.f32 %v497, %v553
    %s557 = scalar_lea.vmem [#allocation2], 96
    %v558 = vld [vmem:[%s557] sm:$0xff]
    %v559 = vld [vmem:[%s557 + $0x8] sm:$0xff]
    %v560 = vld [vmem:[%s557 + $0x10] sm:$0xf]
    %v561 = vld [vmem:[%s557 + $0x18] sm:$0xf]
    %v562 = vrot.slane %v382, 3
    %v563 = vrot.slane %v384, 2
    %v564 = vsel %vm398, %v563, %v562
    %v565 = vsel %vm69, %v564, 0
    %v568 = vsel %vm402, %v560, 0
    %v571 = vsel %vm402, %v561, 0
    %573 = vmatpush.msra.mxu0 0.0
    %574 = vmatpush.msra.mxu0 0.0
    %575 = vmatpush.msra.mxu0 0.0
    %576 = vmatpush.msra.mxu0 0.0
    %577 = vmatpush.msra.mxu0 0.0
    %578 = vmatpush.msra.mxu0 0.0
    %579 = vmatpush.msra.mxu0 0.0
    %580 = vmatpush.msra.mxu0 0.0
    %581 = vmatpush.msra.mxu0 0.0
    %582 = vmatpush.msra.mxu0 0.0
    %583 = vmatpush.msra.mxu0 0.0
    %584 = vmatpush.msra.mxu0 0.0
    %585 = vmatpush.msra.mxu0 0.0
    %586 = vmatpush.msra.mxu0 0.0
    %587 = vmatpush.msra.mxu0 %v568
    %588 = vmatpush.msra.mxu0 %v558
    %589 = vmatmul.f32.gmra.mxu0 %v565
    %v590 = vpop.f32.mrf.mxu0
    %v591 = vadd.f32 0.0, %v590
    %592 = vdwg.mxu0
    %593 = vmatpush.msra.mxu0 0.0
    %594 = vmatpush.msra.mxu0 0.0
    %595 = vmatpush.msra.mxu0 0.0
    %596 = vmatpush.msra.mxu0 0.0
    %597 = vmatpush.msra.mxu0 0.0
    %598 = vmatpush.msra.mxu0 0.0
    %599 = vmatpush.msra.mxu0 0.0
    %600 = vmatpush.msra.mxu0 0.0
    %601 = vmatpush.msra.mxu0 0.0
    %602 = vmatpush.msra.mxu0 0.0
    %603 = vmatpush.msra.mxu0 0.0
    %604 = vmatpush.msra.mxu0 0.0
    %605 = vmatpush.msra.mxu0 0.0
    %606 = vmatpush.msra.mxu0 0.0
    %607 = vmatpush.msra.mxu0 %v571
    %608 = vmatpush.msra.mxu0 %v559
    %609 = vmatmul.f32.gmra.mxu0 %v565
    %v610 = vpop.f32.mrf.mxu0
    %v611 = vadd.f32 0.0, %v610
    %612 = vdwg.mxu0
    %v613 = vadd.f32 %v555, %v591
    %v614 = vadd.f32 %v556, %v611
    %s615 = scalar_lea.vmem [#allocation2], 128
    %v616 = vld [vmem:[%s615] sm:$0xff]
    %v617 = vld [vmem:[%s615 + $0x8] sm:$0xff]
    %v618 = vld [vmem:[%s615 + $0x10] sm:$0xf]
    %v619 = vld [vmem:[%s615 + $0x18] sm:$0xf]
    %v620 = vrot.slane %v382, 4
    %v621 = vrot.slane %v384, 3
    %v622 = vsel %vm398, %v621, %v620
    %v623 = vsel %vm69, %v622, 0
    %v626 = vsel %vm402, %v618, 0
    %v629 = vsel %vm402, %v619, 0
    %631 = vmatpush.msra.mxu0 0.0
    %632 = vmatpush.msra.mxu0 0.0
    %633 = vmatpush.msra.mxu0 0.0
    %634 = vmatpush.msra.mxu0 0.0
    %635 = vmatpush.msra.mxu0 0.0
    %636 = vmatpush.msra.mxu0 0.0
    %637 = vmatpush.msra.mxu0 0.0
    %638 = vmatpush.msra.mxu0 0.0
    %639 = vmatpush.msra.mxu0 0.0
    %640 = vmatpush.msra.mxu0 0.0
    %641 = vmatpush.msra.mxu0 0.0
    %642 = vmatpush.msra.mxu0 0.0
    %643 = vmatpush.msra.mxu0 0.0
    %644 = vmatpush.msra.mxu0 0.0
    %645 = vmatpush.msra.mxu0 %v626
    %646 = vmatpush.msra.mxu0 %v616
    %647 = vmatmul.f32.gmra.mxu0 %v623
    %v648 = vpop.f32.mrf.mxu0
    %v649 = vadd.f32 0.0, %v648
    %650 = vdwg.mxu0
    %651 = vmatpush.msra.mxu0 0.0
    %652 = vmatpush.msra.mxu0 0.0
    %653 = vmatpush.msra.mxu0 0.0
    %654 = vmatpush.msra.mxu0 0.0
    %655 = vmatpush.msra.mxu0 0.0
    %656 = vmatpush.msra.mxu0 0.0
    %657 = vmatpush.msra.mxu0 0.0
    %658 = vmatpush.msra.mxu0 0.0
    %659 = vmatpush.msra.mxu0 0.0
    %660 = vmatpush.msra.mxu0 0.0
    %661 = vmatpush.msra.mxu0 0.0
    %662 = vmatpush.msra.mxu0 0.0
    %663 = vmatpush.msra.mxu0 0.0
    %664 = vmatpush.msra.mxu0 0.0
    %665 = vmatpush.msra.mxu0 %v629
    %666 = vmatpush.msra.mxu0 %v617
    %667 = vmatmul.f32.gmra.mxu0 %v623
    %v668 = vpop.f32.mrf.mxu0
    %v669 = vadd.f32 0.0, %v668
    %670 = vdwg.mxu0
    %v671 = vadd.f32 %v613, %v649
    %v672 = vadd.f32 %v614, %v669
    %s673 = scalar_lea.vmem [#allocation2], 160
    %v674 = vld [vmem:[%s673] sm:$0xff]
    %v675 = vld [vmem:[%s673 + $0x8] sm:$0xff]
    %v676 = vld [vmem:[%s673 + $0x10] sm:$0xf]
    %v677 = vld [vmem:[%s673 + $0x18] sm:$0xf]
    %v678 = vrot.slane %v382, 5
    %v679 = vrot.slane %v384, 4
    %v680 = vsel %vm398, %v679, %v678
    %v681 = vsel %vm69, %v680, 0
    %v684 = vsel %vm402, %v676, 0
    %v687 = vsel %vm402, %v677, 0
    %689 = vmatpush.msra.mxu0 0.0
    %690 = vmatpush.msra.mxu0 0.0
    %691 = vmatpush.msra.mxu0 0.0
    %692 = vmatpush.msra.mxu0 0.0
    %693 = vmatpush.msra.mxu0 0.0
    %694 = vmatpush.msra.mxu0 0.0
    %695 = vmatpush.msra.mxu0 0.0
    %696 = vmatpush.msra.mxu0 0.0
    %697 = vmatpush.msra.mxu0 0.0
    %698 = vmatpush.msra.mxu0 0.0
    %699 = vmatpush.msra.mxu0 0.0
    %700 = vmatpush.msra.mxu0 0.0
    %701 = vmatpush.msra.mxu0 0.0
    %702 = vmatpush.msra.mxu0 0.0
    %703 = vmatpush.msra.mxu0 %v684
    %704 = vmatpush.msra.mxu0 %v674
    %705 = vmatmul.f32.gmra.mxu0 %v681
    %v706 = vpop.f32.mrf.mxu0
    %v707 = vadd.f32 0.0, %v706
    %708 = vdwg.mxu0
    %709 = vmatpush.msra.mxu0 0.0
    %710 = vmatpush.msra.mxu0 0.0
    %711 = vmatpush.msra.mxu0 0.0
    %712 = vmatpush.msra.mxu0 0.0
    %713 = vmatpush.msra.mxu0 0.0
    %714 = vmatpush.msra.mxu0 0.0
    %715 = vmatpush.msra.mxu0 0.0
    %716 = vmatpush.msra.mxu0 0.0
    %717 = vmatpush.msra.mxu0 0.0
    %718 = vmatpush.msra.mxu0 0.0
    %719 = vmatpush.msra.mxu0 0.0
    %720 = vmatpush.msra.mxu0 0.0
    %721 = vmatpush.msra.mxu0 0.0
    %722 = vmatpush.msra.mxu0 0.0
    %723 = vmatpush.msra.mxu0 %v687
    %724 = vmatpush.msra.mxu0 %v675
    %725 = vmatmul.f32.gmra.mxu0 %v681
    %v726 = vpop.f32.mrf.mxu0
    %v727 = vadd.f32 0.0, %v726
    %728 = vdwg.mxu0
    %v729 = vadd.f32 %v671, %v707
    %v730 = vadd.f32 %v672, %v727
    %s731 = scalar_lea.vmem [#allocation2], 192
    %v732 = vld [vmem:[%s731] sm:$0xff]
    %v733 = vld [vmem:[%s731 + $0x8] sm:$0xff]
    %v734 = vld [vmem:[%s731 + $0x10] sm:$0xf]
    %v735 = vld [vmem:[%s731 + $0x18] sm:$0xf]
    %v736 = vrot.slane %v382, 6
    %v737 = vrot.slane %v384, 5
    %v738 = vsel %vm398, %v737, %v736
    %v739 = vsel %vm69, %v738, 0
    %v742 = vsel %vm402, %v734, 0
    %v745 = vsel %vm402, %v735, 0
    %747 = vmatpush.msra.mxu0 0.0
    %748 = vmatpush.msra.mxu0 0.0
    %749 = vmatpush.msra.mxu0 0.0
    %750 = vmatpush.msra.mxu0 0.0
    %751 = vmatpush.msra.mxu0 0.0
    %752 = vmatpush.msra.mxu0 0.0
    %753 = vmatpush.msra.mxu0 0.0
    %754 = vmatpush.msra.mxu0 0.0
    %755 = vmatpush.msra.mxu0 0.0
    %756 = vmatpush.msra.mxu0 0.0
    %757 = vmatpush.msra.mxu0 0.0
    %758 = vmatpush.msra.mxu0 0.0
    %759 = vmatpush.msra.mxu0 0.0
    %760 = vmatpush.msra.mxu0 0.0
    %761 = vmatpush.msra.mxu0 %v742
    %762 = vmatpush.msra.mxu0 %v732
    %763 = vmatmul.f32.gmra.mxu0 %v739
    %v764 = vpop.f32.mrf.mxu0
    %v765 = vadd.f32 0.0, %v764
    %766 = vdwg.mxu0
    %767 = vmatpush.msra.mxu0 0.0
    %768 = vmatpush.msra.mxu0 0.0
    %769 = vmatpush.msra.mxu0 0.0
    %770 = vmatpush.msra.mxu0 0.0
    %771 = vmatpush.msra.mxu0 0.0
    %772 = vmatpush.msra.mxu0 0.0
    %773 = vmatpush.msra.mxu0 0.0
    %774 = vmatpush.msra.mxu0 0.0
    %775 = vmatpush.msra.mxu0 0.0
    %776 = vmatpush.msra.mxu0 0.0
    %777 = vmatpush.msra.mxu0 0.0
    %778 = vmatpush.msra.mxu0 0.0
    %779 = vmatpush.msra.mxu0 0.0
    %780 = vmatpush.msra.mxu0 0.0
    %781 = vmatpush.msra.mxu0 %v745
    %782 = vmatpush.msra.mxu0 %v733
    %783 = vmatmul.f32.gmra.mxu0 %v739
    %v784 = vpop.f32.mrf.mxu0
    %v785 = vadd.f32 0.0, %v784
    %786 = vdwg.mxu0
    %v787 = vadd.f32 %v729, %v765
    %v788 = vadd.f32 %v730, %v785
    %s789 = scalar_lea.vmem [#allocation2], 224
    %v790 = vld [vmem:[%s789] sm:$0xff]
    %v791 = vld [vmem:[%s789 + $0x8] sm:$0xff]
    %v792 = vld [vmem:[%s789 + $0x10] sm:$0xf]
    %v793 = vld [vmem:[%s789 + $0x18] sm:$0xf]
    %v794 = vrot.slane %v382, 7
    %v795 = vrot.slane %v384, 6
    %v796 = vsel %vm398, %v795, %v794
    %v797 = vsel %vm69, %v796, 0
    %v800 = vsel %vm402, %v792, 0
    %v803 = vsel %vm402, %v793, 0
    %805 = vmatpush.msra.mxu0 0.0
    %806 = vmatpush.msra.mxu0 0.0
    %807 = vmatpush.msra.mxu0 0.0
    %808 = vmatpush.msra.mxu0 0.0
    %809 = vmatpush.msra.mxu0 0.0
    %810 = vmatpush.msra.mxu0 0.0
    %811 = vmatpush.msra.mxu0 0.0
    %812 = vmatpush.msra.mxu0 0.0
    %813 = vmatpush.msra.mxu0 0.0
    %814 = vmatpush.msra.mxu0 0.0
    %815 = vmatpush.msra.mxu0 0.0
    %816 = vmatpush.msra.mxu0 0.0
    %817 = vmatpush.msra.mxu0 0.0
    %818 = vmatpush.msra.mxu0 0.0
    %819 = vmatpush.msra.mxu0 %v800
    %820 = vmatpush.msra.mxu0 %v790
    %821 = vmatmul.f32.gmra.mxu0 %v797
    %v822 = vpop.f32.mrf.mxu0
    %v823 = vadd.f32 0.0, %v822
    %824 = vdwg.mxu0
    %825 = vmatpush.msra.mxu0 0.0
    %826 = vmatpush.msra.mxu0 0.0
    %827 = vmatpush.msra.mxu0 0.0
    %828 = vmatpush.msra.mxu0 0.0
    %829 = vmatpush.msra.mxu0 0.0
    %830 = vmatpush.msra.mxu0 0.0
    %831 = vmatpush.msra.mxu0 0.0
    %832 = vmatpush.msra.mxu0 0.0
    %833 = vmatpush.msra.mxu0 0.0
    %834 = vmatpush.msra.mxu0 0.0
    %835 = vmatpush.msra.mxu0 0.0
    %836 = vmatpush.msra.mxu0 0.0
    %837 = vmatpush.msra.mxu0 0.0
    %838 = vmatpush.msra.mxu0 0.0
    %839 = vmatpush.msra.mxu0 %v803
    %840 = vmatpush.msra.mxu0 %v791
    %841 = vmatmul.f32.gmra.mxu0 %v797
    %v842 = vpop.f32.mrf.mxu0
    %v843 = vadd.f32 0.0, %v842
    %844 = vdwg.mxu0
    %v845 = vadd.f32 %v787, %v823
    %v846 = vadd.f32 %v788, %v843
    %s847 = scalar_lea.vmem [#allocation2], 256
    %v848 = vld [vmem:[%s847] sm:$0xff]
    %v849 = vld [vmem:[%s847 + $0x8] sm:$0xff]
    %v850 = vld [vmem:[%s847 + $0x10] sm:$0xf]
    %v851 = vld [vmem:[%s847 + $0x18] sm:$0xf]
    %v854 = vrot.slane %v385, 7
    %v855 = vsel %vm398, %v854, %v383
    %v856 = vsel %vm69, %v855, 0
    %v859 = vsel %vm402, %v850, 0
    %v862 = vsel %vm402, %v851, 0
    %864 = vmatpush.msra.mxu0 0.0
    %865 = vmatpush.msra.mxu0 0.0
    %866 = vmatpush.msra.mxu0 0.0
    %867 = vmatpush.msra.mxu0 0.0
    %868 = vmatpush.msra.mxu0 0.0
    %869 = vmatpush.msra.mxu0 0.0
    %870 = vmatpush.msra.mxu0 0.0
    %871 = vmatpush.msra.mxu0 0.0
    %872 = vmatpush.msra.mxu0 0.0
    %873 = vmatpush.msra.mxu0 0.0
    %874 = vmatpush.msra.mxu0 0.0
    %875 = vmatpush.msra.mxu0 0.0
    %876 = vmatpush.msra.mxu0 0.0
    %877 = vmatpush.msra.mxu0 0.0
    %878 = vmatpush.msra.mxu0 %v859
    %879 = vmatpush.msra.mxu0 %v848
    %880 = vmatmul.f32.gmra.mxu0 %v856
    %v881 = vpop.f32.mrf.mxu0
    %v882 = vadd.f32 0.0, %v881
    %883 = vdwg.mxu0
    %884 = vmatpush.msra.mxu0 0.0
    %885 = vmatpush.msra.mxu0 0.0
    %886 = vmatpush.msra.mxu0 0.0
    %887 = vmatpush.msra.mxu0 0.0
    %888 = vmatpush.msra.mxu0 0.0
    %889 = vmatpush.msra.mxu0 0.0
    %890 = vmatpush.msra.mxu0 0.0
    %891 = vmatpush.msra.mxu0 0.0
    %892 = vmatpush.msra.mxu0 0.0
    %893 = vmatpush.msra.mxu0 0.0
    %894 = vmatpush.msra.mxu0 0.0
    %895 = vmatpush.msra.mxu0 0.0
    %896 = vmatpush.msra.mxu0 0.0
    %897 = vmatpush.msra.mxu0 0.0
    %898 = vmatpush.msra.mxu0 %v862
    %899 = vmatpush.msra.mxu0 %v849
    %900 = vmatmul.f32.gmra.mxu0 %v856
    %v901 = vpop.f32.mrf.mxu0
    %v902 = vadd.f32 0.0, %v901
    %903 = vdwg.mxu0
    %v904 = vadd.f32 %v845, %v882
    %v905 = vadd.f32 %v846, %v902
    %v906 = vld [vmem:[%s3] sm:$0x3]
    %v908 = vperm.slane %v906, 0
    %v909 = vperm.slane %v906, 1
    %v912 = vadd.f32 %v904, %v908
    %v913 = vadd.f32 %v905, %v909
    %v916 = vrot.slane %v913, 6
    %vm917 = vcmask 1041408
    %v918 = vsel %vm917, %v912, %v916
    %920 = vst [vmem:[#allocation5] sm:$0xf] %v918
    // Predicated region
    $region22: #{tpu_custom_call.1} parent=1 // pred_check
      _
    $region23: #{tpu_custom_call.1} parent=1 // pred_check_branch
      %922 = sbr.rel (0) target = $region25
    $region24: #{tpu_custom_call.1} parent=1 // pred_region
      %924 = vsyncadd [#allocation4], 0
      %s926 = sshll.u32 [#allocation5], 4
      %s927 = int_to_ptr.vmem [resolvable:$true] %s926
      %s928 = sshll.u32 %s4, 4
      %s929 = int_to_ptr.hbm [resolvable:$true] %s928
      %931 = dma.vmem_to_hbm [thread:$0]  %s927, 64, %s929, [#allocation4]
    $region25: #{tpu_custom_call.1} parent=1 // pred_fallthru
      _
    // Predicated region
    $region26: #{tpu_custom_call.1} parent=1 // pred_check
      _
    $region27: #{tpu_custom_call.1} parent=1 // pred_check_branch
      %933 = sbr.rel (0) target = $region29
    $region28: #{tpu_custom_call.1} parent=1 // pred_region
      %935 = dma.done [#allocation4], 64
    $region29: #{tpu_custom_call.1} parent=1 // pred_fallthru
      _
    %936 = vsyncpa [#allocation3], 1
    %937 = vsyncpa [#allocation4], 1

</llo_original>
